<compile_context>
chip_gen: v7x
topology: tpu7x:2x2x1
jax: 0.10.0
libtpu: 0.0.40
codegen_flags: <defaults>
</compile_context>

<pallas_src>
import functools
import math

import jax
import jax.numpy as jnp
from jax.experimental import pallas as pl
from jax.experimental.pallas import tpu as pltpu


def _round_up(x, m):
    return ((x + m - 1) // m) * m


def _vmem_cap_bytes():
    """Per-TensorCore VMEM capacity; conservative fallback if query fails."""
    try:
        return int(pltpu.get_tpu_info().vmem_capacity_bytes)
    except Exception:
        return 64 * 1024 * 1024  # v7x per-TC VMEM (smallest of v5e/v6e/v7x)


# ---------------------------------------------------------------------------
# Kernel 1: hoisted input projection  proj = x @ Wi^T + bi  (all timesteps).
# One large (S*B, I) @ (I, H) GEMM instead of S skinny per-step matmuls.
# ---------------------------------------------------------------------------
def _proj_kernel(x_ref, wi_ref, bi_ref, o_ref):
    o_ref[...] = (
        jnp.dot(x_ref[...], wi_ref[...], preferred_element_type=jnp.float32)
        + bi_ref[...]
    )


def _proj_vmem_need(tm, k, tn, col_bufs, in_bytes):
    return (2 * tm * k * in_bytes          # x rows (double-buffered)
            + col_bufs * k * tn * in_bytes  # Wi^T
            + col_bufs * tn * 4             # bi
            + 2 * tm * tn * 4)              # f32 output (double-buffered)


def _input_projection(x2d, wi_t, bi2):
    m, k = x2d.shape
    n = wi_t.shape[1]
    cap = _vmem_cap_bytes()

    # Column tile: keep the whole Hp resident when reasonable, otherwise tile
    # (keeps the resident Wi^T block + output buffers inside v7x's 64 MiB).
    tn = n
    if n > 2048:
        for cand in (2048, 1024, 512, 256, 128):
            if n % cand == 0:
                tn = cand
                break
    single_col = (tn == n)
    col_bufs = 1 if single_col else 2
    in_bytes = jnp.dtype(x2d.dtype).itemsize

    # Row tile: biggest candidate that divides m and fits the VMEM budget.
    tm = 8
    for cand in (1024, 512, 256, 128, 64, 32, 16, 8):
        if m % cand == 0 and _proj_vmem_need(cand, k, tn, col_bufs, in_bytes) <= 0.75 * cap:
            tm = cand
            break

    need = _proj_vmem_need(tm, k, tn, col_bufs, in_bytes)
    vmem_limit = min(max(int(need * 1.25) + (4 << 20), 32 << 20), int(cap * 0.92))

    # Grid-invariant operands (single column tile): single-buffer them.
    w_kwargs = dict(pipeline_mode=pl.Buffered(1)) if single_col else {}

    return pl.pallas_call(
        _proj_kernel,
        out_shape=jax.ShapeDtypeStruct((m, n), jnp.float32),
        grid_spec=pltpu.PrefetchScalarGridSpec(
            num_scalar_prefetch=0,
            grid=(m // tm, n // tn),
            in_specs=[
                pl.BlockSpec((tm, k), lambda r, c: (r, 0)),                  # x rows
                pl.BlockSpec((k, tn), lambda r, c: (0, c), **w_kwargs),      # Wi^T
                pl.BlockSpec((1, tn), lambda r, c: (0, c), **w_kwargs),      # bi
            ],
            out_specs=pl.BlockSpec((tm, tn), lambda r, c: (r, c)),
        ),
        compiler_params=pltpu.CompilerParams(
            dimension_semantics=("parallel", "parallel"),
            vmem_limit_bytes=vmem_limit,
        ),
    )(x2d, wi_t, bi2)


# ---------------------------------------------------------------------------
# Kernel 2: leaky recurrence, chunked over time.
#   per step:  h = (1 - alpha) * h + alpha * relu(proj_t + bh + h @ Wh^T)
# Hidden state is carried across time-chunk grid steps in VMEM scratch.
# ---------------------------------------------------------------------------
def _recur_kernel(proj_ref, wh_ref, bh_ref, out_ref, h_scr, *, alpha, t_chunk):
    c = pl.program_id(1)                      # time-chunk axis (axis 0 = batch tile)

    @pl.when(c == 0)
    def _():
        h_scr[...] = jnp.zeros_like(h_scr)    # init_hidden (hidden=None) semantics

    bp, hp = h_scr.shape
    wh = wh_ref[...]                           # (Hp, Hp), resident, single-buffered
    # Hoist the bias broadcast once (JAX does not CSE broadcast_in_dim).
    bias = jnp.broadcast_to(bh_ref[...], (bp, hp)).astype(jnp.float32)
    a = jnp.float32(alpha)
    one_minus_a = jnp.float32(1.0 - alpha)

    def step(t, h):
        rec = jnp.dot(h.astype(wh.dtype), wh, preferred_element_type=jnp.float32)
        # Per-step read from the already-resident input buffer — no full-chunk
        # `drive` temp (avoids spilling past the 64-vreg file at large t_chunk).
        h_new = jnp.maximum(proj_ref[t] + bias + rec, 0.0)
        h = h * one_minus_a + h_new * a
        out_ref[t] = h
        return h

    h0 = h_scr[...]
    if t_chunk == 1:
        h = step(0, h0)
    else:
        # Bounded-unroll loop: scheduler visibility without unbounded live ranges.
        h = jax.lax.fori_loop(0, t_chunk, step, h0, unroll=min(t_chunk, 8))
    h_scr[...] = h


def _recur_vmem_need(t_chunk, bp_tile, hp, w_bytes):
    chunk = t_chunk * bp_tile * hp * 4
    return (2 * chunk            # proj chunk in  (double-buffered)
            + 2 * chunk          # output chunk   (double-buffered)
            + hp * hp * w_bytes  # Wh^T           (single-buffered)
            + hp * 4             # bh             (single-buffered)
            + bp_tile * hp * 4)  # hidden scratch


def ctrnn_forward(x, wi, bi, wh, bh, alpha, *,
                  t_chunk=32, batch_tiles=1, weights_dtype=jnp.float32):
    """CTRNN forward.

    x  : (S, B, I) float32
    wi : (H, I), bi: (H,)   -- input2h weights/bias (PyTorch layout)
    wh : (H, H), bh: (H,)   -- h2h weights/bias
    weights_dtype : jnp.float32 (exact) or jnp.bfloat16 (fast, f32 accumulate)
    batch_tiles   : set to 2 on v7x when padded batch >= 16 to use both TCs.
    Returns (output (S,B,H), hidden (B,H), input_projection (S,B,H)).
    """
    S, B, I = x.shape
    H = wi.shape[0]
    w_dt = jnp.dtype(weights_dtype)
    w_bytes = w_dt.itemsize
    cap = _vmem_cap_bytes()

    # Pad to TPU-friendly tiles: H lane-dense (x128), B sublane-dense (x8).
    # Zero padding keeps padded hidden units exactly zero through the
    # recurrence; padded batch rows / timesteps are sliced off at the end.
    Bp = _round_up(B, 8)
    Hp = _round_up(H, 128)

    # Optional batch split (v7x megacore for the sequential recurrence).
    batch_tiles = max(1, int(batch_tiles))
    if Bp % (8 * batch_tiles) != 0:
        batch_tiles = 1
    bp_tile = Bp // batch_tiles

    # Size the time chunk so chunk buffers + resident Wh^T fit scoped VMEM.
    t_chunk = max(1, min(int(t_chunk), S))
    while t_chunk > 1 and _recur_vmem_need(t_chunk, bp_tile, Hp, w_bytes) > 0.8 * cap:
        t_chunk //= 2
    Sp = _round_up(S, t_chunk)

    x_p = jnp.zeros((Sp, Bp, I), w_dt).at[:S, :B, :].set(x.astype(w_dt))
    wi_t = jnp.zeros((I, Hp), w_dt).at[:, :H].set(wi.T.astype(w_dt))
    wh_t = jnp.zeros((Hp, Hp), w_dt).at[:H, :H].set(wh.T.astype(w_dt))
    bi2 = jnp.zeros((1, Hp), jnp.float32).at[0, :H].set(bi)
    bh2 = jnp.zeros((1, Hp), jnp.float32).at[0, :H].set(bh)

    # (1) Hoisted, batched input projection for all timesteps (one dense GEMM).
    #     NOTE: bh is NOT folded in here — input_projection must equal x@Wi^T+bi.
    proj2d = _input_projection(x_p.reshape(Sp * Bp, I), wi_t, bi2)
    proj = proj2d.reshape(Sp, Bp, Hp)

    # (2) Sequential recurrence over (batch tile, time chunk) grid.
    need = _recur_vmem_need(t_chunk, bp_tile, Hp, w_bytes)
    vmem_limit = min(max(int(need * 1.25) + (4 << 20), 32 << 20), int(cap * 0.92))

    kernel = functools.partial(_recur_kernel, alpha=float(alpha), t_chunk=t_chunk)
    out = pl.pallas_call(
        kernel,
        out_shape=jax.ShapeDtypeStruct((Sp, Bp, Hp), jnp.float32),
        grid_spec=pltpu.PrefetchScalarGridSpec(
            num_scalar_prefetch=0,
            grid=(batch_tiles, Sp // t_chunk),
            in_specs=[
                pl.BlockSpec((t_chunk, bp_tile, Hp), lambda b, c: (c, b, 0)),   # proj chunk
                pl.BlockSpec((Hp, Hp), lambda b, c: (0, 0),
                             pipeline_mode=pl.Buffered(1)),                     # Wh^T (resident)
                pl.BlockSpec((1, Hp), lambda b, c: (0, 0),
                             pipeline_mode=pl.Buffered(1)),                     # bh
            ],
            out_specs=pl.BlockSpec((t_chunk, bp_tile, Hp), lambda b, c: (c, b, 0)),
            scratch_shapes=[pltpu.VMEM((bp_tile, Hp), jnp.float32)],            # carried hidden
        ),
        compiler_params=pltpu.CompilerParams(
            dimension_semantics=("parallel", "arbitrary"),   # time is sequential
            vmem_limit_bytes=vmem_limit,
        ),
    )(proj, wh_t, bh2)

    output = out[:S, :B, :H]
    hidden = output[S - 1]                    # final hidden == output[-1]
    input_projection = proj[:S, :B, :H]
    return output, hidden, input_projection


def _ref_forward(x, wi, bi, wh, bh, alpha):
    """Pure-JAX reference (mirrors the PyTorch loop)."""
    def step(h, xt):
        proj = xt @ wi.T + bi
        h_new = jnp.maximum(proj + h @ wh.T + bh, 0.0)
        h = h * (1.0 - alpha) + h_new * alpha
        return h, (h, proj)

    B = x.shape[1]
    H = wi.shape[0]
    h0 = jnp.zeros((B, H), jnp.float32)
    h_fin, (out, proj) = jax.lax.scan(step, h0, x)
    return out, h_fin, proj


if __name__ == "__main__":
    # Small config consistent with the module's forward semantics.
    seq_len, batch, input_size, hidden_size = 8, 2, 4, 32
    dt, tau = 20.0, 100.0
    alpha = dt / tau

    key = jax.random.PRNGKey(0)
    k_x, k_wi, k_bi, k_wh, k_bh = jax.random.split(key, 5)

    # Deterministic parameter init (PyTorch nn.Linear-style uniform bounds).
    bound_i = 1.0 / math.sqrt(input_size)
    bound_h = 1.0 / math.sqrt(hidden_size)
    wi = jax.random.uniform(k_wi, (hidden_size, input_size), jnp.float32,
                            -bound_i, bound_i)          # (H, I) like torch weight
    bi = jax.random.uniform(k_bi, (hidden_size,), jnp.float32, -bound_i, bound_i)
    wh = jax.random.uniform(k_wh, (hidden_size, hidden_size), jnp.float32,
                            -bound_h, bound_h)          # (H, H)
    bh = jax.random.uniform(k_bh, (hidden_size,), jnp.float32, -bound_h, bound_h)

    x = jax.random.normal(k_x, (seq_len, batch, input_size), jnp.float32)

    # Exact (f32) path.
    out, h_fin, proj = ctrnn_forward(x, wi, bi, wh, bh, alpha)
    out = jax.block_until_ready(out)
    h_fin = jax.block_until_ready(h_fin)
    proj = jax.block_until_ready(proj)

    out_r, h_r, proj_r = _ref_forward(x, wi, bi, wh, bh, alpha)
    assert out.shape == (seq_len, batch, hidden_size)
    assert h_fin.shape == (batch, hidden_size)
    assert proj.shape == (seq_len, batch, hidden_size)
    assert jnp.allclose(out, out_r, atol=1e-5, rtol=1e-5)
    assert jnp.allclose(h_fin, h_r, atol=1e-5, rtol=1e-5)
    assert jnp.allclose(proj, proj_r, atol=1e-5, rtol=1e-5)

    # Fast bf16-weight path (looser tolerance; f32 accumulation throughout).
    out_b, h_b, _ = ctrnn_forward(x, wi, bi, wh, bh, alpha,
                                  weights_dtype=jnp.bfloat16)
    out_b = jax.block_until_ready(out_b)
    assert jnp.allclose(out_b, out_r, atol=5e-2, rtol=5e-2)
    assert jnp.allclose(h_b, h_r, atol=5e-2, rtol=5e-2)

    print("KERNEL_OK")
</pallas_src>

<mosaic_0001>
module attributes {stable_mosaic.version = 11 : i64} {
  func.func @_proj_kernel(%arg0: i32, %arg1: i32, %arg2: memref<64x4xf32, #tpu.memory_space<vmem>>, %arg3: memref<4x128xf32, #tpu.memory_space<vmem>>, %arg4: memref<1x128xf32, #tpu.memory_space<vmem>>, %arg5: memref<64x128xf32, #tpu.memory_space<vmem>>) attributes {dimension_semantics = [#tpu.dimension_semantics<parallel>, #tpu.dimension_semantics<parallel>], iteration_bounds = array<i64: 1, 1>, scalar_prefetch = 0 : i64, scratch_operands = 0 : i64, tpu.core_type = #tpu.core_type<tc>, window_params = [{transform_indices = @transform_0, window_bounds = array<i64: 64, 4>}, {pipeline_mode = #tpu.pipeline_mode<synchronous>, transform_indices = @transform_1, window_bounds = array<i64: 4, 128>}, {pipeline_mode = #tpu.pipeline_mode<synchronous>, transform_indices = @transform_2, window_bounds = array<i64: 1, 128>}, {transform_indices = @transform_3, window_bounds = array<i64: 64, 128>}]} {
    %c0 = arith.constant 0 : index
    %c0_0 = arith.constant 0 : index
    %0 = vector.load %arg2[%c0, %c0_0] : memref<64x4xf32, #tpu.memory_space<vmem>>, vector<64x4xf32>
    %c0_1 = arith.constant 0 : index
    %c0_2 = arith.constant 0 : index
    %1 = vector.load %arg3[%c0_1, %c0_2] : memref<4x128xf32, #tpu.memory_space<vmem>>, vector<4x128xf32>
    %cst = arith.constant dense<0.000000e+00> : vector<64x128xf32>
    %2 = tpu.matmul %0, %1, %cst {dimension_numbers = #tpu.dot_dimension_numbers<[1], [0], [0], [1], [0, 0, 1, 1], [], []>} : vector<64x4xf32>, vector<4x128xf32>, vector<64x128xf32> -> vector<64x128xf32>
    %c0_3 = arith.constant 0 : index
    %c0_4 = arith.constant 0 : index
    %3 = vector.load %arg4[%c0_3, %c0_4] : memref<1x128xf32, #tpu.memory_space<vmem>>, vector<1x128xf32>
    %4 = vector.broadcast %3 : vector<1x128xf32> to vector<64x128xf32>
    %5 = arith.addf %2, %4 : vector<64x128xf32>
    %c0_5 = arith.constant 0 : index
    %c0_6 = arith.constant 0 : index
    %6 = vector.load %arg5[%c0_5, %c0_6] : memref<64x128xf32, #tpu.memory_space<vmem>>, vector<64x128xf32>
    tpu.vector_store %arg5[%c0_5, %c0_6], %5 {strides = array<i32>} : memref<64x128xf32, #tpu.memory_space<vmem>>, vector<64x128xf32>,
    return
  }
  func.func @transform_0(%arg0: i32, %arg1: i32) -> (i32, i32) {
    %c0_i32 = arith.constant 0 : i32
    %c0_i32_0 = arith.constant 0 : i32
    return %arg0, %c0_i32 : i32, i32
  }
  func.func @transform_1(%arg0: i32, %arg1: i32) -> (i32, i32) {
    %c0_i32 = arith.constant 0 : i32
    %c0_i32_0 = arith.constant 0 : i32
    return %c0_i32, %arg1 : i32, i32
  }
  func.func @transform_2(%arg0: i32, %arg1: i32) -> (i32, i32) {
    %c0_i32 = arith.constant 0 : i32
    %c0_i32_0 = arith.constant 0 : i32
    return %c0_i32, %arg1 : i32, i32
  }
  func.func @transform_3(%arg0: i32, %arg1: i32) -> (i32, i32) {
    %c0_i32 = arith.constant 0 : i32
    return %arg0, %arg1 : i32, i32
  }
}

</mosaic_0001>

<llo_original>
// kernel: tpu_custom_call.1
$region0: #{tpu_custom_call.1}
  #allocation0 [shape = 'u32[]', space=smem, size = 0x4, offset = 0x4, fixed_abs, tag = 'smem constant byte address 0x4 - core index']
  #allocation1 [shape = 'u32[144,128]{1,0:T(1,128)}', space=vmem, size = 0x12000, scoped, tag = 'internal scratch']
  %s0 = inlined_call_operand.vmem [shape: f32[64,4], index: 0, kind: input, shape index: {}]
  %s1 = inlined_call_operand.vmem [shape: f32[4,128], index: 1, kind: input, shape index: {}]
  %s2 = inlined_call_operand.vmem [shape: f32[1,128], index: 2, kind: input, shape index: {}]
  %s3 = inlined_call_operand.hbm [shape: f32[64,128], index: 3, kind: output, shape index: {}]
  %s4 = sld [smem:[#allocation0]]
  $region22: #{tpu_custom_call.1} parent=0
    _
  %s6 = ssub.s32 1, %s4
  %s7 = scalar_select 0, %s6, %s4
  $region1: #{tpu_custom_call.1} parent=0
    #allocation2 [shape = 'u8[32768]{0}', space=vmem, size = 0x8000, scoped, tag = 'output window, operand 0, single buffered']
    #allocation3 [shape = 's32[1]{0}', space=sflag, size = 0x4, scoped, tag = 'scoped memory for tpu_custom_call.1']
    %8 = vsyncpa [#allocation3], 0
    // Predicated region
    $region2: #{tpu_custom_call.1} parent=1 // pred_check
      _
    $region3: #{tpu_custom_call.1} parent=1 // pred_check_branch
      %10 = sbr.rel (0) target = $region5
    $region4: #{tpu_custom_call.1} parent=1 // pred_region
      _
    $region5: #{tpu_custom_call.1} parent=1 // pred_fallthru
      _
    // Predicated region
    $region6: #{tpu_custom_call.1} parent=1 // pred_check
      _
    $region7: #{tpu_custom_call.1} parent=1 // pred_check_branch
      %12 = sbr.rel (0) target = $region9
    $region8: #{tpu_custom_call.1} parent=1 // pred_region
      _
    $region9: #{tpu_custom_call.1} parent=1 // pred_fallthru
      _
    // Predicated region
    $region10: #{tpu_custom_call.1} parent=1 // pred_check
      _
    $region11: #{tpu_custom_call.1} parent=1 // pred_check_branch
      %14 = sbr.rel (0) target = $region13
    $region12: #{tpu_custom_call.1} parent=1 // pred_region
      _
    $region13: #{tpu_custom_call.1} parent=1 // pred_fallthru
      _
    %v15 = vld [vmem:[%s0] sm:$0xff]
    %v16 = vld [vmem:[%s0 + $0x8] sm:$0xff]
    %v17 = vld [vmem:[%s0 + $0x10] sm:$0xff]
    %v18 = vld [vmem:[%s0 + $0x18] sm:$0xff]
    %v19 = vld [vmem:[%s0 + $0x20] sm:$0xff]
    %v20 = vld [vmem:[%s0 + $0x28] sm:$0xff]
    %v21 = vld [vmem:[%s0 + $0x30] sm:$0xff]
    %v22 = vld [vmem:[%s0 + $0x38] sm:$0xff]
    %v23 = vld [vmem:[%s1] sm:$0xf]
    %v24 = vld [vmem:[%s2] sm:$0x1]
    %v26 = vlaneseq
    %v27 = vshrl.u32 %v26, 7
    %v28 = vsub.s32 0, %v27
    %v29 = vrot.slane %v24, %v28
    %vm31 = vcmask 31744
    %v33 = vsel %vm31, %v15, 0
    %v36 = vsel %vm31, %v16, 0
    %v39 = vsel %vm31, %v17, 0
    %v42 = vsel %vm31, %v18, 0
    %v45 = vsel %vm31, %v19, 0
    %v48 = vsel %vm31, %v20, 0
    %v51 = vsel %vm31, %v21, 0
    %v54 = vsel %vm31, %v22, 0
    %vm56 = vcmask 1043456
    %v58 = vsel %vm56, %v23, 0
    %60 = vmatprep.subr.mxu0 0.0
    %61 = vmatpush1.msra.mxu0 %v58
    %62 = vmatprep.subr.mxu0 0.0
    %63 = vmatpush1.msra.mxu0 0.0
    %64 = vmatprep.subr.mxu0 0.0
    %65 = vmatpush1.msra.mxu0 0.0
    %66 = vmatprep.subr.mxu0 0.0
    %67 = vmatpush1.msra.mxu0 0.0
    %68 = vmatprep.subr.mxu0 0.0
    %69 = vmatpush1.msra.mxu0 0.0
    %70 = vmatprep.subr.mxu0 0.0
    %71 = vmatpush1.msra.mxu0 0.0
    %72 = vmatprep.subr.mxu0 0.0
    %73 = vmatpush1.msra.mxu0 0.0
    %74 = vmatprep.subr.mxu0 0.0
    %75 = vmatpush1.msra.mxu0 0.0
    %76 = vmatprep.subr.mxu0 0.0
    %77 = vmatpush1.msra.mxu0 0.0
    %78 = vmatprep.subr.mxu0 0.0
    %79 = vmatpush1.msra.mxu0 0.0
    %80 = vmatprep.subr.mxu0 0.0
    %81 = vmatpush1.msra.mxu0 0.0
    %82 = vmatprep.subr.mxu0 0.0
    %83 = vmatpush1.msra.mxu0 0.0
    %84 = vmatprep.subr.mxu0 0.0
    %85 = vmatpush1.msra.mxu0 0.0
    %86 = vmatprep.subr.mxu0 0.0
    %87 = vmatpush1.msra.mxu0 0.0
    %88 = vmatprep.subr.mxu0 0.0
    %89 = vmatpush1.msra.mxu0 0.0
    %90 = vmatprep.subr.mxu0 0.0
    %91 = vmatpush1.msra.mxu0 0.0
    %92 = vmatprep.subr.mxu0 0.0
    %93 = vmatpush1.msra.mxu0 0.0
    %94 = vmatprep.subr.mxu0 0.0
    %95 = vmatpush1.msra.mxu0 0.0
    %96 = vmatprep.subr.mxu0 0.0
    %97 = vmatpush1.msra.mxu0 0.0
    %98 = vmatprep.subr.mxu0 0.0
    %99 = vmatpush1.msra.mxu0 0.0
    %100 = vmatprep.subr.mxu0 0.0
    %101 = vmatpush1.msra.mxu0 0.0
    %102 = vmatprep.subr.mxu0 0.0
    %103 = vmatpush1.msra.mxu0 0.0
    %104 = vmatprep.subr.mxu0 0.0
    %105 = vmatpush1.msra.mxu0 0.0
    %106 = vmatprep.subr.mxu0 0.0
    %107 = vmatpush1.msra.mxu0 0.0
    %108 = vmatprep.subr.mxu0 0.0
    %109 = vmatpush1.msra.mxu0 0.0
    %110 = vmatprep.subr.mxu0 0.0
    %111 = vmatpush1.msra.mxu0 0.0
    %112 = vmatprep.subr.mxu0 0.0
    %113 = vmatpush1.msra.mxu0 0.0
    %114 = vmatprep.subr.mxu0 0.0
    %115 = vmatpush1.msra.mxu0 0.0
    %116 = vmatprep.subr.mxu0 0.0
    %117 = vmatpush1.msra.mxu0 0.0
    %118 = vmatprep.subr.mxu0 0.0
    %119 = vmatpush1.msra.mxu0 0.0
    %120 = vmatprep.subr.mxu0 0.0
    %121 = vmatpush1.msra.mxu0 0.0
    %122 = vmatprep.subr.mxu0 0.0
    %123 = vmatpush1.msra.mxu0 0.0
    %124 = vmatprep.mubr.f32.mxu0 0.0
    %125 = vmatmul.mubr.f32.gmra.mrb[0].mxu0 %v33
    %v126 = vpop.f32.mrb[0].mxu0
    %v127 = vadd.f32 %v29, %v126
    %v128 = vpop.f32.mrb[0].mxu0
    %129 = vmatprep.mubr.f32.mxu0 0.0
    %130 = vmatmul.mubr.f32.gmra.mrb[0].mxu0 %v36
    %v131 = vpop.f32.mrb[0].mxu0
    %v132 = vadd.f32 %v29, %v131
    %v133 = vpop.f32.mrb[0].mxu0
    %134 = vmatprep.mubr.f32.mxu0 0.0
    %135 = vmatmul.mubr.f32.gmra.mrb[0].mxu0 %v39
    %v136 = vpop.f32.mrb[0].mxu0
    %v137 = vadd.f32 %v29, %v136
    %v138 = vpop.f32.mrb[0].mxu0
    %139 = vmatprep.mubr.f32.mxu0 0.0
    %140 = vmatmul.mubr.f32.gmra.mrb[0].mxu0 %v42
    %v141 = vpop.f32.mrb[0].mxu0
    %v142 = vadd.f32 %v29, %v141
    %v143 = vpop.f32.mrb[0].mxu0
    %144 = vmatprep.mubr.f32.mxu0 0.0
    %145 = vmatmul.mubr.f32.gmra.mrb[0].mxu0 %v45
    %v146 = vpop.f32.mrb[0].mxu0
    %v147 = vadd.f32 %v29, %v146
    %v148 = vpop.f32.mrb[0].mxu0
    %149 = vmatprep.mubr.f32.mxu0 0.0
    %150 = vmatmul.mubr.f32.gmra.mrb[0].mxu0 %v48
    %v151 = vpop.f32.mrb[0].mxu0
    %v152 = vadd.f32 %v29, %v151
    %v153 = vpop.f32.mrb[0].mxu0
    %154 = vmatprep.mubr.f32.mxu0 0.0
    %155 = vmatmul.mubr.f32.gmra.mrb[0].mxu0 %v51
    %v156 = vpop.f32.mrb[0].mxu0
    %v157 = vadd.f32 %v29, %v156
    %v158 = vpop.f32.mrb[0].mxu0
    %159 = vmatprep.mubr.f32.mxu0 0.0
    %160 = vmatmul.mubr.f32.gmra.mrb[0].mxu0 %v54
    %v161 = vpop.f32.mrb[0].mxu0
    %v162 = vadd.f32 %v29, %v161
    %v163 = vpop.f32.mrb[0].mxu0
    %164 = vdwg.mxu0
    %165 = vst [vmem:[#allocation2] sm:$0xff] %v127
    %166 = vst [vmem:[#allocation2 + $0x8] sm:$0xff] %v132
    %167 = vst [vmem:[#allocation2 + $0x10] sm:$0xff] %v137
    %168 = vst [vmem:[#allocation2 + $0x18] sm:$0xff] %v142
    %169 = vst [vmem:[#allocation2 + $0x20] sm:$0xff] %v147
    %170 = vst [vmem:[#allocation2 + $0x28] sm:$0xff] %v152
    %171 = vst [vmem:[#allocation2 + $0x30] sm:$0xff] %v157
    %172 = vst [vmem:[#allocation2 + $0x38] sm:$0xff] %v162
    // Predicated region
    $region14: #{tpu_custom_call.1} parent=1 // pred_check
      _
    $region15: #{tpu_custom_call.1} parent=1 // pred_check_branch
      %174 = sbr.rel (0) target = $region17
    $region16: #{tpu_custom_call.1} parent=1 // pred_region
      %s176 = ssub.s32 1024, 1024
      %177 = vsyncadd [#allocation3], %s176
      %s178 = sshll.u32 [#allocation2], 4
      %s179 = int_to_ptr.vmem [resolvable:$true] %s178
      %184 = dma.vmem_to_hbm [thread:$0]  %s179, 1024, %s3, [#allocation3], 128, 128, 8
    $region17: #{tpu_custom_call.1} parent=1 // pred_fallthru
      _
    // Predicated region
    $region18: #{tpu_custom_call.1} parent=1 // pred_check
      _
    $region19: #{tpu_custom_call.1} parent=1 // pred_check_branch
      %186 = sbr.rel (0) target = $region21
    $region20: #{tpu_custom_call.1} parent=1 // pred_region
      %187 = dma.done [#allocation3], 1024
    $region21: #{tpu_custom_call.1} parent=1 // pred_fallthru
      _
    %188 = vsyncpa [#allocation3], 1

</llo_original>
